<compile_context>
chip_gen: v7x
topology: tpu7x:2x2x1
jax: 0.10.0
libtpu: 0.0.40
codegen_flags: <defaults>
</compile_context>

<pallas_src>
from functools import partial

import jax
import jax.numpy as jnp
from jax.experimental import pallas as pl
from jax.experimental.pallas import tpu as pltpu

EPS = 1e-5  # nn.BatchNorm1d default


def _fc_bn_relu_dropout_kernel(x_ref, w_ref, gamma_ref, beta_ref, *rest,
                               keep_threshold, scale):
    if keep_threshold is not None:
        bits_ref, o_ref = rest
    else:
        (o_ref,) = rest

    # ---- Linear (bias folded out, see header): u = x @ W^T, f32 accumulate ----
    u = jnp.dot(x_ref[...], w_ref[...], preferred_element_type=jnp.float32)

    # ---- BatchNorm1d training-mode stats (per-feature over the batch) ----
    mean = jnp.mean(u, axis=0, keepdims=True)                       # [1, tH]
    var = jnp.mean(jnp.square(u - mean), axis=0, keepdims=True)     # [1, tH]
    inv = jax.lax.rsqrt(var + EPS)                                  # EUP (free slot)

    # Reassociate BN affine (+ dropout 1/(1-p), which commutes with ReLU since
    # scale > 0) into one per-feature scale/shift: z = relu(u * a + c).
    g = gamma_ref[...] * inv                                        # [1, tH]
    a = g * scale                                                   # [1, tH]
    c = (beta_ref[...] - mean * g) * scale                          # [1, tH]
    z = jnp.maximum(u * a + c, 0.0)                                 # one mul+add+max on [N, tH]

    # ---- Dropout: integer-threshold compare + select ----
    if keep_threshold is not None:
        keep = bits_ref[...] >= jnp.uint32(keep_threshold)
        z = jnp.where(keep, z, 0.0)

    o_ref[...] = z.astype(o_ref.dtype)


def _pick_h_tile(h_pad):
    for t in (1024, 512, 256, 128):
        if h_pad % t == 0:
            return min(t, h_pad)
    return h_pad


def fc_bn_relu_dropout(x, w_t, b, gamma, beta, key, *, drop_p=0.5):
    """x: [N, D_in] f32, w_t: [D_in, H] f32 (torch weight transposed),
    b/gamma/beta: [H] f32, key: jax PRNG key.  Returns [N, H] f32.

    Note: `b` is mathematically cancelled by training-mode BatchNorm
    (mean subtraction removes any per-feature constant), so it is not
    forwarded to the kernel."""
    del b
    n, d = x.shape
    h = w_t.shape[1]

    if drop_p >= 1.0:  # torch.nn.Dropout(p=1) zeroes everything
        return jnp.zeros((n, h), jnp.float32)

    # ---- lane-dense padding of the hidden dimension ----
    h_pad = ((h + 127) // 128) * 128
    pad = h_pad - h
    w_p = jnp.pad(w_t, ((0, 0), (0, pad)))
    gamma_p = jnp.pad(gamma.reshape(1, h), ((0, 0), (0, pad)), constant_values=1.0)
    beta_p = jnp.pad(beta.reshape(1, h), ((0, 0), (0, pad)))

    # ---- bf16 MXU operands, f32 accumulation ----
    x_bf = x.astype(jnp.bfloat16)
    w_bf = w_p.astype(jnp.bfloat16)

    t_h = _pick_h_tile(h_pad)
    grid = (h_pad // t_h,)

    # ---- dropout bits + threshold (integer space), scale folded into BN ----
    use_dropout = drop_p > 0.0
    if use_dropout:
        bits = jax.random.bits(key, (n, h_pad), dtype=jnp.uint32)
        keep_threshold = min(int(round(drop_p * 2.0**32)), 2**32 - 1)
        scale = 1.0 / (1.0 - drop_p)
        extra_inputs = (bits,)
        extra_specs = [pl.BlockSpec((n, t_h), lambda j: (0, j))]   # dropout bits tile
    else:
        keep_threshold = None
        scale = 1.0
        extra_inputs = ()
        extra_specs = []

    kernel = partial(_fc_bn_relu_dropout_kernel,
                     keep_threshold=keep_threshold, scale=scale)

    out = pl.pallas_call(
        kernel,
        out_shape=jax.ShapeDtypeStruct((n, h_pad), jnp.float32),
        grid_spec=pltpu.PrefetchScalarGridSpec(
            num_scalar_prefetch=0,
            grid=grid,
            in_specs=[
                pl.BlockSpec((n, d), lambda j: (0, 0)),     # x (resident across H tiles)
                pl.BlockSpec((d, t_h), lambda j: (0, j)),   # weight tile (double-buffered)
                pl.BlockSpec((1, t_h), lambda j: (0, j)),   # gamma tile
                pl.BlockSpec((1, t_h), lambda j: (0, j)),   # beta tile
            ] + extra_specs,
            out_specs=pl.BlockSpec((n, t_h), lambda j: (0, j)),
        ),
        compiler_params=pltpu.CompilerParams(
            dimension_semantics=("parallel",)),
    )(x_bf, w_bf, gamma_p, beta_p, *extra_inputs)

    return out[:, :h]


if __name__ == "__main__":
    # Small shapes consistent with the module: batch=8, input_dim=16, hidden=32
    N, D_IN, HIDDEN = 8, 16, 32
    DROP_P = 0.5

    key = jax.random.PRNGKey(0)
    kx, kw, kb, kdrop = jax.random.split(key, 4)

    x = jax.random.normal(kx, (N, D_IN), dtype=jnp.float32)

    # Deterministic parameter init (PyTorch Linear-style uniform bound).
    bound = 1.0 / float(D_IN) ** 0.5
    w = jax.random.uniform(kw, (HIDDEN, D_IN), jnp.float32, -bound, bound)
    b = jax.random.uniform(kb, (HIDDEN,), jnp.float32, -bound, bound)
    gamma = jnp.ones((HIDDEN,), jnp.float32)   # BatchNorm1d weight
    beta = jnp.zeros((HIDDEN,), jnp.float32)   # BatchNorm1d bias

    out = fc_bn_relu_dropout(x, w.T, b, gamma, beta, kdrop, drop_p=DROP_P)
    jax.block_until_ready(out)

    assert out.shape == (N, HIDDEN) and out.dtype == jnp.float32
    assert bool(jnp.all(jnp.isfinite(out)))

    # Also exercise the p=0 path (no dropout-bits input / compare).
    out_nodrop = fc_bn_relu_dropout(x, w.T, b, gamma, beta, kdrop, drop_p=0.0)
    jax.block_until_ready(out_nodrop)
    assert out_nodrop.shape == (N, HIDDEN)
    assert bool(jnp.all(jnp.isfinite(out_nodrop)))
    assert bool(jnp.all(out_nodrop >= 0.0))    # ReLU output is non-negative

    print("KERNEL_OK")
</pallas_src>

<mosaic_0001>
module attributes {stable_mosaic.version = 11 : i64} {
  func.func @_fc_bn_relu_dropout_kernel(%arg0: i32, %arg1: memref<8x16xbf16, #tpu.memory_space<vmem>>, %arg2: memref<16x128xbf16, #tpu.memory_space<vmem>>, %arg3: memref<1x128xf32, #tpu.memory_space<vmem>>, %arg4: memref<1x128xf32, #tpu.memory_space<vmem>>, %arg5: memref<8x128xi32, #tpu.memory_space<vmem>>, %arg6: memref<8x128xf32, #tpu.memory_space<vmem>>) attributes {dimension_semantics = [#tpu.dimension_semantics<parallel>], iteration_bounds = array<i64: 1>, scalar_prefetch = 0 : i64, scratch_operands = 0 : i64, tpu.core_type = #tpu.core_type<tc>, window_params = [{pipeline_mode = #tpu.pipeline_mode<synchronous>, transform_indices = @transform_0, window_bounds = array<i64: 8, 16>}, {transform_indices = @transform_1, window_bounds = array<i64: 16, 128>}, {transform_indices = @transform_2, window_bounds = array<i64: 1, 128>}, {transform_indices = @transform_3, window_bounds = array<i64: 1, 128>}, {transform_indices = @transform_4, window_bounds = array<i64: 8, 128>}, {transform_indices = @transform_5, window_bounds = array<i64: 8, 128>}]} {
    %c0 = arith.constant 0 : index
    %c0_0 = arith.constant 0 : index
    %0 = vector.load %arg1[%c0, %c0_0] : memref<8x16xbf16, #tpu.memory_space<vmem>>, vector<8x16xbf16>
    %c0_1 = arith.constant 0 : index
    %c0_2 = arith.constant 0 : index
    %1 = vector.load %arg2[%c0_1, %c0_2] : memref<16x128xbf16, #tpu.memory_space<vmem>>, vector<16x128xbf16>
    %cst = arith.constant dense<0.000000e+00> : vector<8x128xf32>
    %2 = tpu.matmul %0, %1, %cst {dimension_numbers = #tpu.dot_dimension_numbers<[1], [0], [0], [1], [0, 0, 1, 1], [], []>} : vector<8x16xbf16>, vector<16x128xbf16>, vector<8x128xf32> -> vector<8x128xf32>
    %cst_3 = arith.constant dense<0.000000e+00> : vector<128xf32>
    %3 = vector.multi_reduction <add>, %2, %cst_3 [0] : vector<8x128xf32> to vector<128xf32>
    %4 = vector.shape_cast %3 : vector<128xf32> to vector<1x128xf32>
    %cst_4 = arith.constant 8.000000e+00 : f32
    %5 = vector.broadcast %cst_4 : f32 to vector<1x128xf32>
    %6 = arith.divf %4, %5 : vector<1x128xf32>
    %7 = vector.broadcast %6 : vector<1x128xf32> to vector<8x128xf32>
    %8 = arith.subf %2, %7 : vector<8x128xf32>
    %9 = arith.mulf %8, %8 : vector<8x128xf32>
    %cst_5 = arith.constant dense<0.000000e+00> : vector<128xf32>
    %10 = vector.multi_reduction <add>, %9, %cst_5 [0] : vector<8x128xf32> to vector<128xf32>
    %11 = vector.shape_cast %10 : vector<128xf32> to vector<1x128xf32>
    %cst_6 = arith.constant 8.000000e+00 : f32
    %12 = vector.broadcast %cst_6 : f32 to vector<1x128xf32>
    %13 = arith.divf %11, %12 : vector<1x128xf32>
    %cst_7 = arith.constant 9.99999974E-6 : f32
    %14 = vector.broadcast %cst_7 : f32 to vector<1x128xf32>
    %15 = arith.addf %13, %14 : vector<1x128xf32>
    %16 = math.rsqrt %15 : vector<1x128xf32>
    %c0_8 = arith.constant 0 : index
    %c0_9 = arith.constant 0 : index
    %17 = vector.load %arg3[%c0_8, %c0_9] : memref<1x128xf32, #tpu.memory_space<vmem>>, vector<1x128xf32>
    %18 = arith.mulf %17, %16 : vector<1x128xf32>
    %cst_10 = arith.constant 2.000000e+00 : f32
    %19 = vector.broadcast %cst_10 : f32 to vector<1x128xf32>
    %20 = arith.mulf %18, %19 : vector<1x128xf32>
    %c0_11 = arith.constant 0 : index
    %c0_12 = arith.constant 0 : index
    %21 = vector.load %arg4[%c0_11, %c0_12] : memref<1x128xf32, #tpu.memory_space<vmem>>, vector<1x128xf32>
    %22 = arith.mulf %6, %18 : vector<1x128xf32>
    %23 = arith.subf %21, %22 : vector<1x128xf32>
    %cst_13 = arith.constant 2.000000e+00 : f32
    %24 = vector.broadcast %cst_13 : f32 to vector<1x128xf32>
    %25 = arith.mulf %23, %24 : vector<1x128xf32>
    %26 = vector.broadcast %20 : vector<1x128xf32> to vector<8x128xf32>
    %27 = arith.mulf %2, %26 : vector<8x128xf32>
    %28 = vector.broadcast %25 : vector<1x128xf32> to vector<8x128xf32>
    %29 = arith.addf %27, %28 : vector<8x128xf32>
    %cst_14 = arith.constant 0.000000e+00 : f32
    %30 = vector.broadcast %cst_14 : f32 to vector<8x128xf32>
    %31 = arith.maximumf %29, %30 : vector<8x128xf32>
    %c0_15 = arith.constant 0 : index
    %c0_16 = arith.constant 0 : index
    %32 = vector.load %arg5[%c0_15, %c0_16] : memref<8x128xi32, #tpu.memory_space<vmem>>, vector<8x128xi32>
    %c-2147483648_i32 = arith.constant -2147483648 : i32
    %33 = vector.broadcast %c-2147483648_i32 : i32 to vector<8x128xi32>
    %34 = arith.cmpi uge, %32, %33 : vector<8x128xi32>
    %cst_17 = arith.constant 0.000000e+00 : f32
    %35 = vector.broadcast %cst_17 : f32 to vector<8x128xf32>
    %36 = arith.select %34, %31, %35 : vector<8x128xi1>, vector<8x128xf32>
    %c0_18 = arith.constant 0 : index
    %c0_19 = arith.constant 0 : index
    %37 = vector.load %arg6[%c0_18, %c0_19] : memref<8x128xf32, #tpu.memory_space<vmem>>, vector<8x128xf32>
    tpu.vector_store %arg6[%c0_18, %c0_19], %36 {strides = array<i32>} : memref<8x128xf32, #tpu.memory_space<vmem>>, vector<8x128xf32>,
    return
  }
  func.func @transform_0(%arg0: i32) -> (i32, i32) {
    %c0_i32 = arith.constant 0 : i32
    %c0_i32_0 = arith.constant 0 : i32
    %c0_i32_1 = arith.constant 0 : i32
    return %c0_i32, %c0_i32_0 : i32, i32
  }
  func.func @transform_1(%arg0: i32) -> (i32, i32) {
    %c0_i32 = arith.constant 0 : i32
    %c0_i32_0 = arith.constant 0 : i32
    return %c0_i32, %arg0 : i32, i32
  }
  func.func @transform_2(%arg0: i32) -> (i32, i32) {
    %c0_i32 = arith.constant 0 : i32
    %c0_i32_0 = arith.constant 0 : i32
    return %c0_i32, %arg0 : i32, i32
  }
  func.func @transform_3(%arg0: i32) -> (i32, i32) {
    %c0_i32 = arith.constant 0 : i32
    %c0_i32_0 = arith.constant 0 : i32
    return %c0_i32, %arg0 : i32, i32
  }
  func.func @transform_4(%arg0: i32) -> (i32, i32) {
    %c0_i32 = arith.constant 0 : i32
    %c0_i32_0 = arith.constant 0 : i32
    return %c0_i32, %arg0 : i32, i32
  }
  func.func @transform_5(%arg0: i32) -> (i32, i32) {
    %c0_i32 = arith.constant 0 : i32
    %c0_i32_0 = arith.constant 0 : i32
    return %c0_i32, %arg0 : i32, i32
  }
}

</mosaic_0001>

<llo_original>
// kernel: tpu_custom_call.1
$region0: #{tpu_custom_call.1}
  #allocation0 [shape = 'u32[]', space=smem, size = 0x4, offset = 0x4, fixed_abs, tag = 'smem constant byte address 0x4 - core index']
  #allocation1 [shape = 'u32[144,128]{1,0:T(1,128)}', space=vmem, size = 0x12000, scoped, tag = 'internal scratch']
  %s0 = inlined_call_operand.hbm [shape: bf16[8,16], index: 0, kind: input, shape index: {}]
  %s1 = inlined_call_operand.hbm [shape: bf16[16,128], index: 1, kind: input, shape index: {}]
  %s2 = inlined_call_operand.vmem [shape: f32[1,128], index: 2, kind: input, shape index: {}]
  %s3 = inlined_call_operand.vmem [shape: f32[1,128], index: 3, kind: input, shape index: {}]
  %s4 = inlined_call_operand.vmem [shape: u32[8,128], index: 4, kind: input, shape index: {}]
  %s5 = inlined_call_operand.hbm [shape: f32[8,128], index: 5, kind: output, shape index: {}]
  %s6 = sld [smem:[#allocation0]]
  $region38: #{tpu_custom_call.1} parent=0
    _
  %s8 = ssub.s32 1, %s6
  %s9 = scalar_select 0, %s8, %s6
  $region1: #{tpu_custom_call.1} parent=0
    #allocation2 [shape = 'u8[2048]{0}', space=vmem, size = 0x800, scoped, tag = 'input window, operand 0, single buffered']
    #allocation3 [shape = 's32[1]{0}', space=sflag, size = 0x4, scoped, tag = 'scoped memory for tpu_custom_call.1']
    #allocation4 [shape = 's32[1]{0}', space=sflag, size = 0x4, scoped, tag = 'scoped memory for tpu_custom_call.1']
    #allocation5 [shape = 'u8[4096]{0}', space=vmem, size = 0x1000, scoped, tag = 'input window, operand 1, single buffered']
    #allocation6 [shape = 's32[1]{0}', space=sflag, size = 0x4, scoped, tag = 'scoped memory for tpu_custom_call.1']
    #allocation7 [shape = 'u8[4096]{0}', space=vmem, size = 0x1000, scoped, tag = 'output window, operand 0, single buffered']
    %10 = vsyncpa [#allocation3], 0
    %11 = vsyncpa [#allocation6], 0
    %12 = vsyncpa [#allocation4], 0
    // Predicated region
    $region2: #{tpu_custom_call.1} parent=1 // pred_check
      _
    $region3: #{tpu_custom_call.1} parent=1 // pred_check_branch
      %14 = sbr.rel (0) target = $region5
    $region4: #{tpu_custom_call.1} parent=1 // pred_region
      %s16 = ssub.s32 64, 64
      %17 = vsyncadd [#allocation3], %s16
      %s19 = sshll.u32 [#allocation2], 4
      %s20 = int_to_ptr.vmem [resolvable:$true] %s19
      %22 = dma.hbm_to_vmem [thread:$0]  %s0, 64, %s20, [#allocation3]
    $region5: #{tpu_custom_call.1} parent=1 // pred_fallthru
      _
    // Predicated region
    $region6: #{tpu_custom_call.1} parent=1 // pred_check
      _
    $region7: #{tpu_custom_call.1} parent=1 // pred_check_branch
      %24 = sbr.rel (0) target = $region9
    $region8: #{tpu_custom_call.1} parent=1 // pred_region
      %s26 = ssub.s32 128, 128
      %27 = vsyncadd [#allocation6], %s26
      %s28 = sshll.u32 [#allocation5], 4
      %s29 = int_to_ptr.vmem [resolvable:$true] %s28
      %34 = dma.hbm_to_vmem [thread:$0]  %s1, 128, %s29, [#allocation6], 64, 64, 4
    $region9: #{tpu_custom_call.1} parent=1 // pred_fallthru
      _
    // Predicated region
    $region10: #{tpu_custom_call.1} parent=1 // pred_check
      _
    $region11: #{tpu_custom_call.1} parent=1 // pred_check_branch
      %36 = sbr.rel (0) target = $region13
    $region12: #{tpu_custom_call.1} parent=1 // pred_region
      _
    $region13: #{tpu_custom_call.1} parent=1 // pred_fallthru
      _
    // Predicated region
    $region14: #{tpu_custom_call.1} parent=1 // pred_check
      _
    $region15: #{tpu_custom_call.1} parent=1 // pred_check_branch
      %38 = sbr.rel (0) target = $region17
    $region16: #{tpu_custom_call.1} parent=1 // pred_region
      _
    $region17: #{tpu_custom_call.1} parent=1 // pred_fallthru
      _
    // Predicated region
    $region18: #{tpu_custom_call.1} parent=1 // pred_check
      _
    $region19: #{tpu_custom_call.1} parent=1 // pred_check_branch
      %40 = sbr.rel (0) target = $region21
    $region20: #{tpu_custom_call.1} parent=1 // pred_region
      _
    $region21: #{tpu_custom_call.1} parent=1 // pred_fallthru
      _
    // Predicated region
    $region22: #{tpu_custom_call.1} parent=1 // pred_check
      _
    $region23: #{tpu_custom_call.1} parent=1 // pred_check_branch
      %42 = sbr.rel (0) target = $region25
    $region24: #{tpu_custom_call.1} parent=1 // pred_region
      %43 = dma.done [#allocation3], 64
    $region25: #{tpu_custom_call.1} parent=1 // pred_fallthru
      _
    // Predicated region
    $region26: #{tpu_custom_call.1} parent=1 // pred_check
      _
    $region27: #{tpu_custom_call.1} parent=1 // pred_check_branch
      %45 = sbr.rel (0) target = $region29
    $region28: #{tpu_custom_call.1} parent=1 // pred_region
      %46 = dma.done [#allocation6], 128
    $region29: #{tpu_custom_call.1} parent=1 // pred_fallthru
      _
    %v48 = vld [vmem:[#allocation2] sm:$0xf]
    %v49 = vld [vmem:[#allocation5] sm:$0xf]
    %v50 = vld [vmem:[#allocation5 + $0x4] sm:$0xf]
    %v53 = vunpack.c.l.b16 %v49
    %v54 = vunpack.c.l.b16 %v50
    %v55 = vpack.c.b16 %v54, %v53
    %vm57 = vcmask 130048
    %v59 = vsel %vm57, %v48, 0
    %61 = vmatprep.subr.bf16.mxu0 0
    %62 = vmatpush1.bf16.msra.mxu0 %v55
    %63 = vmatprep.subr.bf16.mxu0 0
    %64 = vmatpush1.bf16.msra.mxu0 0
    %65 = vmatprep.subr.bf16.mxu0 0
    %66 = vmatpush1.bf16.msra.mxu0 0
    %67 = vmatprep.subr.bf16.mxu0 0
    %68 = vmatpush1.bf16.msra.mxu0 0
    %69 = vmatprep.subr.bf16.mxu0 0
    %70 = vmatpush1.bf16.msra.mxu0 0
    %71 = vmatprep.subr.bf16.mxu0 0
    %72 = vmatpush1.bf16.msra.mxu0 0
    %73 = vmatprep.subr.bf16.mxu0 0
    %74 = vmatpush1.bf16.msra.mxu0 0
    %75 = vmatprep.subr.bf16.mxu0 0
    %76 = vmatpush1.bf16.msra.mxu0 0
    %77 = vmatprep.subr.bf16.mxu0 0
    %78 = vmatpush1.bf16.msra.mxu0 0
    %79 = vmatprep.subr.bf16.mxu0 0
    %80 = vmatpush1.bf16.msra.mxu0 0
    %81 = vmatprep.subr.bf16.mxu0 0
    %82 = vmatpush1.bf16.msra.mxu0 0
    %83 = vmatprep.subr.bf16.mxu0 0
    %84 = vmatpush1.bf16.msra.mxu0 0
    %85 = vmatprep.subr.bf16.mxu0 0
    %86 = vmatpush1.bf16.msra.mxu0 0
    %87 = vmatprep.subr.bf16.mxu0 0
    %88 = vmatpush1.bf16.msra.mxu0 0
    %89 = vmatprep.subr.bf16.mxu0 0
    %90 = vmatpush1.bf16.msra.mxu0 0
    %91 = vmatprep.subr.bf16.mxu0 0
    %92 = vmatpush1.bf16.msra.mxu0 0
    %93 = vmatprep.mubr.bf16.mxu0 0
    %94 = vmatmul.mubr.bf16.gmra.mrb[0].mxu0 %v59
    %v95 = vpop.f32.mrb[0].mxu0
    %v96 = vadd.f32 0.0, %v95
    %v97 = vpop.f32.mrb[0].mxu0
    %v98 = vpop.f32.mrb[0].mxu0
    %v99 = vpop.f32.mrb[0].mxu0
    %100 = vdwg.mxu0
    %v101 = vrot.slane %v96, 4
    %v102 = vadd.f32 %v96, %v101
    %v103 = vrot.slane %v102, 2
    %v104 = vadd.f32 %v102, %v103
    %v105 = vrot.slane %v104, 1
    %v106 = vadd.f32 %v104, %v105
    %v107 = vrcp.pop 8.0
    %v108 = vmul.f32 %v106, %v107
    %v109 = vsub.f32 %v96, %v108
    %v110 = vmul.f32 %v109, %v109
    %v111 = vrot.slane %v110, 4
    %v112 = vadd.f32 %v110, %v111
    %v113 = vrot.slane %v112, 2
    %v114 = vadd.f32 %v112, %v113
    %v115 = vrot.slane %v114, 1
    %v116 = vadd.f32 %v114, %v115
    %v117 = vmul.f32 %v116, %v107
    %v118 = vadd.f32 %v117, 1e-05
    %v119 = vrsqrt.pop %v118
    %v120 = vld [vmem:[%s2] sm:$0x1]
    %v121 = vmul.f32 %v120, %v119
    %v122 = vmul.f32 %v121, 2.0
    %v123 = vld [vmem:[%s3] sm:$0x1]
    %v124 = vmul.f32 %v108, %v121
    %v125 = vsub.f32 %v123, %v124
    %v126 = vmul.f32 %v125, 2.0
    %v128 = vlaneseq
    %v129 = vshrl.u32 %v128, 7
    %v130 = vsub.s32 0, %v129
    %v131 = vrot.slane %v122, %v130
    %v133 = vmul.f32 %v96, %v131
    %v135 = vlaneseq
    %v136 = vshrl.u32 %v135, 7
    %v137 = vsub.s32 0, %v136
    %v138 = vrot.slane %v126, %v137
    %v140 = vadd.f32 %v133, %v138
    %v141 = vmax.f32 %v140, 0.0
    %v142 = vld [vmem:[%s4] sm:$0xff]
    %vm143 = vcmp.ge.u32.totalorder %v142, 2147483648
    %v144 = vsel %vm143, %v141, 0.0
    %145 = vst [vmem:[#allocation7] sm:$0xff] %v144
    // Predicated region
    $region30: #{tpu_custom_call.1} parent=1 // pred_check
      _
    $region31: #{tpu_custom_call.1} parent=1 // pred_check_branch
      %147 = sbr.rel (0) target = $region33
    $region32: #{tpu_custom_call.1} parent=1 // pred_region
      %s149 = ssub.s32 128, 128
      %150 = vsyncadd [#allocation4], %s149
      %s152 = sshll.u32 [#allocation7], 4
      %s153 = int_to_ptr.vmem [resolvable:$true] %s152
      %155 = dma.vmem_to_hbm [thread:$0]  %s153, 128, %s5, [#allocation4]
    $region33: #{tpu_custom_call.1} parent=1 // pred_fallthru
      _
    // Predicated region
    $region34: #{tpu_custom_call.1} parent=1 // pred_check
      _
    $region35: #{tpu_custom_call.1} parent=1 // pred_check_branch
      %157 = sbr.rel (0) target = $region37
    $region36: #{tpu_custom_call.1} parent=1 // pred_region
      %158 = dma.done [#allocation4], 128
    $region37: #{tpu_custom_call.1} parent=1 // pred_fallthru
      _
    %159 = vsyncpa [#allocation3], 1
    %160 = vsyncpa [#allocation6], 1
    %161 = vsyncpa [#allocation4], 1

</llo_original>
